<compile_context>
chip_gen: v5e
topology: v5e:2x2
jax: 0.10.0
libtpu: 0.0.40
codegen_flags: <defaults>
</compile_context>

<pallas_src>
import math
from functools import partial

import jax
import jax.numpy as jnp
from jax.experimental import pallas as pl
from jax.experimental.pallas import tpu as pltpu


# ------------------------- tiled linear: y = x @ w.T + b --------------------

def _linear_kernel(x_ref, w_ref, b_ref, o_ref, acc_ref):
    # x: (tm, tk), w: (tn, tk) (PyTorch Linear layout, contracted over k), b: (1, tn)
    k = pl.program_id(2)

    @pl.when(k == 0)
    def _init():
        acc_ref[...] = jnp.zeros_like(acc_ref)

    acc_ref[...] += jax.lax.dot_general(
        x_ref[...], w_ref[...],
        dimension_numbers=(((1,), (1,)), ((), ())),   # x @ w.T without a transpose copy
        preferred_element_type=jnp.float32,
    )

    @pl.when(k == pl.num_programs(2) - 1)
    def _finalize():
        o_ref[...] = (acc_ref[...] + b_ref[...].astype(jnp.float32)).astype(o_ref.dtype)


def _pick_tile(dim, target):
    """Largest clean tile: whole dim if small, else `target` when it divides."""
    if dim <= target:
        return dim
    return target if dim % target == 0 else dim


def pallas_linear(x, w, b, *, tm=256, tn=256, tk=512):
    """y = x @ w.T + b with PyTorch Linear weight layout w: (N, K).

    Tiles are multiples of 128 (MXU friendly on v5e/v6e/v7x) and small enough to stay
    well inside the default scoped-VMEM limit with double buffering.
    """
    M, K = x.shape
    N, K2 = w.shape
    assert K == K2
    tm, tn, tk = _pick_tile(M, tm), _pick_tile(N, tn), _pick_tile(K, tk)
    grid = (M // tm, N // tn, K // tk)
    return pl.pallas_call(
        _linear_kernel,
        out_shape=jax.ShapeDtypeStruct((M, N), x.dtype),
        grid_spec=pltpu.PrefetchScalarGridSpec(
            num_scalar_prefetch=0,
            grid=grid,
            in_specs=[
                pl.BlockSpec((tm, tk), lambda i, j, k: (i, k)),
                pl.BlockSpec((tn, tk), lambda i, j, k: (j, k)),
                pl.BlockSpec((1, tn), lambda i, j, k: (0, j)),
            ],
            out_specs=pl.BlockSpec((tm, tn), lambda i, j, k: (i, j)),
            scratch_shapes=[pltpu.VMEM((tm, tn), jnp.float32)],
        ),
        compiler_params=pltpu.CompilerParams(
            dimension_semantics=("parallel", "parallel", "arbitrary")),
    )(x, w, b.reshape(1, N))


# ------------------- relative attention core (skew trick) -------------------

def _rel_attn_kernel(q_ref, k_ref, v_ref, rel_ref, ctx_ref, wavg_ref, *,
                     scaling, max_rel_len, num_heads):
    hg = pl.program_id(1)

    q = q_ref[0].astype(jnp.float32) * scaling        # (G, T, Dh), scaling fused here
    k = k_ref[0].astype(jnp.float32)                  # (G, S, Dh)
    v = v_ref[0]                                      # (G, S, Dh)
    rel_emb = rel_ref[...].astype(jnp.float32)        # (R, Dh), R = 2L + 1

    G, T, Dh = q.shape
    S = k.shape[1]
    R = rel_emb.shape[0]

    # content scores: per-head q @ k^T on the MXU -> (G, T, S)
    scores = jax.lax.dot_general(
        q, k, dimension_numbers=(((2,), (2,)), ((0,), (0,))),
        preferred_element_type=jnp.float32)

    # relative-position term via the skew trick: project q onto the tiny (R, Dh)
    # table on the MXU, then place r[:, :, idx(t, s)] into (T, S) with a short
    # static chain of selects (R is small: 2*max_relative_length + 1).
    r = jax.lax.dot_general(
        q, rel_emb, dimension_numbers=(((2,), (1,)), ((), ())),
        preferred_element_type=jnp.float32)           # (G, T, R)
    t_idx = jax.lax.broadcasted_iota(jnp.int32, (T, S), 0)
    s_idx = jax.lax.broadcasted_iota(jnp.int32, (T, S), 1)
    idx = jnp.clip(s_idx - t_idx, -max_rel_len, max_rel_len) + max_rel_len  # (T, S)
    for j in range(R):                                # static unroll, R is tiny
        scores = scores + jnp.where(idx[None] == j, r[:, :, j:j + 1], 0.0)

    # numerically-stable softmax over keys; reciprocal runs on the EUP slot.
    m = jnp.max(scores, axis=-1, keepdims=True)
    e = jnp.exp(scores - m)
    p = e * pl.reciprocal(jnp.sum(e, axis=-1, keepdims=True), approx=True)  # (G, T, S)

    # context: per-head P @ V on the MXU -> (G, T, Dh)
    ctx = jax.lax.dot_general(
        p.astype(v.dtype), v, dimension_numbers=(((2,), (1,)), ((0,), (0,))),
        preferred_element_type=jnp.float32)
    ctx_ref[0] = ctx.astype(ctx_ref.dtype)

    # head-averaged attention weights, accumulated in f32 across head groups
    # (the (B*H, T, S) per-head weights are never written to HBM).
    wsum = jnp.sum(p, axis=0)                         # (T, S) f32

    @pl.when(hg == 0)
    def _():
        wavg_ref[0] = wsum

    @pl.when(hg > 0)
    def _():
        wavg_ref[0] = wavg_ref[0] + wsum

    @pl.when(hg == pl.num_programs(1) - 1)
    def _():
        wavg_ref[0] = wavg_ref[0] * (1.0 / num_heads)


def _rel_attention(q, k, v, rel_emb, *, scaling, max_rel_len, heads_per_step=None):
    """q, k, v: (B, H, T, Dh); rel_emb: (2L+1, Dh).

    Returns (ctx (B, H, T, Dh), head-averaged weights (B, T, T) in f32).
    heads_per_step bounds per-step VMEM (scores are (G, T, T) f32); default = all heads.
    """
    B, H, T, Dh = q.shape
    R = rel_emb.shape[0]
    G = H if heads_per_step is None else heads_per_step
    assert H % G == 0
    n_hg = H // G

    kernel = partial(_rel_attn_kernel, scaling=scaling,
                     max_rel_len=max_rel_len, num_heads=H)
    return pl.pallas_call(
        kernel,
        out_shape=(
            jax.ShapeDtypeStruct((B, H, T, Dh), q.dtype),
            jax.ShapeDtypeStruct((B, T, T), jnp.float32),
        ),
        grid_spec=pltpu.PrefetchScalarGridSpec(
            num_scalar_prefetch=0,
            grid=(B, n_hg),
            in_specs=[
                pl.BlockSpec((1, G, T, Dh), lambda b, hg: (b, hg, 0, 0)),
                pl.BlockSpec((1, G, T, Dh), lambda b, hg: (b, hg, 0, 0)),
                pl.BlockSpec((1, G, T, Dh), lambda b, hg: (b, hg, 0, 0)),
                pl.BlockSpec((R, Dh), lambda b, hg: (0, 0)),
            ],
            out_specs=[
                pl.BlockSpec((1, G, T, Dh), lambda b, hg: (b, hg, 0, 0)),
                pl.BlockSpec((1, T, T), lambda b, hg: (b, 0, 0)),   # revisited over hg
            ],
        ),
        compiler_params=pltpu.CompilerParams(
            dimension_semantics=("parallel", "arbitrary")),
    )(q, k, v, rel_emb)


# ----------------------------- Module forward -------------------------------

def relative_multihead_attention(query, params, num_heads, max_relative_length,
                                 heads_per_step=None):
    """Self-attention forward (query == key == value), eval mode, need_weights=True."""
    T, B, E = query.shape
    H = num_heads
    Dh = E // H
    assert Dh * H == E
    scaling = float(Dh) ** -0.5

    # --- fused in-projection (tiled Pallas matmul, PyTorch weight layout kept) ---
    x2d = query.reshape(T * B, E)
    qkv = pallas_linear(x2d, params["in_proj_weight"], params["in_proj_bias"])  # (T*B, 3E)
    qkv = qkv.reshape(T, B, 3 * E)
    q, k, v = jnp.split(qkv, 3, axis=-1)

    def to_bhtd(x):  # (T, B, E) -> (B, H, T, Dh); BH index == b*H + h (matches torch .view)
        return x.reshape(T, B, H, Dh).transpose(1, 2, 0, 3)

    q, k, v = to_bhtd(q), to_bhtd(k), to_bhtd(v)

    # --- attention core: skew-trick relative attention, all heads of a batch per step ---
    ctx, avg_weights = _rel_attention(
        q, k, v, params["relative_position_keys"],
        scaling=scaling, max_rel_len=max_relative_length,
        heads_per_step=heads_per_step)

    # --- out-projection ---
    ctx = ctx.transpose(2, 0, 1, 3).reshape(T * B, E)   # (T, B, H, Dh) row order
    out = pallas_linear(ctx, params["out_proj_weight"], params["out_proj_bias"])
    out = out.reshape(T, B, E)
    return out, avg_weights


# ----------------------------- pure-JAX reference ----------------------------

def _reference_forward(query, params, num_heads, max_relative_length):
    T, B, E = query.shape
    H = num_heads
    Dh = E // H
    scaling = float(Dh) ** -0.5
    qkv = query.reshape(T * B, E) @ params["in_proj_weight"].T + params["in_proj_bias"]
    qkv = qkv.reshape(T, B, 3 * E)
    q, k, v = jnp.split(qkv, 3, axis=-1)
    q = q * scaling

    def to_bh(x):
        return x.reshape(T, B * H, Dh).transpose(1, 0, 2)

    q, k, v = to_bh(q), to_bh(k), to_bh(v)
    rng = jnp.arange(T)
    idx = jnp.clip(rng[None, :] - rng[:, None],
                   -max_relative_length, max_relative_length) + max_relative_length
    rel_keys = params["relative_position_keys"][idx]               # (T, T, Dh)
    scores = jnp.einsum("btd,bsd->bts", q, k) + jnp.einsum("btd,tsd->bts", q, rel_keys)
    p = jax.nn.softmax(scores, axis=-1)
    ctx = jnp.einsum("bts,bsd->btd", p, v)
    ctx = ctx.transpose(1, 0, 2).reshape(T * B, E)
    out = ctx @ params["out_proj_weight"].T + params["out_proj_bias"]
    out = out.reshape(T, B, E)
    wavg = p.reshape(B, H, T, T).sum(axis=1) / H
    return out, wavg


# ----------------------------- Param init / demo -----------------------------

def xavier_uniform(key, shape):
    fan_out, fan_in = shape[0], shape[1]
    a = math.sqrt(6.0 / (fan_in + fan_out))
    return jax.random.uniform(key, shape, jnp.float32, -a, a)


if __name__ == "__main__":
    embed_dim = 32
    num_heads = 4
    head_dim = embed_dim // num_heads
    max_relative_length = 4
    tgt_len, bsz = 8, 2

    root = jax.random.PRNGKey(0)
    k1, k2, k3, k4 = jax.random.split(root, 4)

    params = {
        "in_proj_weight": xavier_uniform(k1, (3 * embed_dim, embed_dim)),
        "in_proj_bias": jnp.zeros((3 * embed_dim,), jnp.float32),
        "out_proj_weight": xavier_uniform(k2, (embed_dim, embed_dim)),
        "out_proj_bias": jnp.zeros((embed_dim,), jnp.float32),
        "relative_position_keys": xavier_uniform(
            k3, (2 * max_relative_length + 1, head_dim)),
    }

    # layout: (T, B, E) time-major input, matching fairseq convention.
    query = jax.random.normal(k4, (tgt_len, bsz, embed_dim), jnp.float32)

    attn_out, attn_weights = relative_multihead_attention(
        query, params, num_heads, max_relative_length)
    jax.block_until_ready((attn_out, attn_weights))

    assert attn_out.shape == (tgt_len, bsz, embed_dim)
    assert attn_weights.shape == (bsz, tgt_len, tgt_len)

    # correctness check against a pure-JAX reference (loose tol: approx reciprocal
    # in-kernel + default TPU matmul precision in the reference).
    ref_out, ref_w = _reference_forward(query, params, num_heads, max_relative_length)
    err_out = float(jnp.max(jnp.abs(attn_out - ref_out)))
    err_w = float(jnp.max(jnp.abs(attn_weights - ref_w)))
    assert err_out < 2e-2 and err_w < 2e-2, (err_out, err_w)

    print("KERNEL_OK")
</pallas_src>

<mosaic_0001>
module attributes {stable_mosaic.version = 11 : i64} {
  func.func @_linear_kernel(%arg0: i32, %arg1: i32, %arg2: i32, %arg3: memref<16x32xf32, #tpu.memory_space<vmem>>, %arg4: memref<96x32xf32, #tpu.memory_space<vmem>>, %arg5: memref<1x96xf32, #tpu.memory_space<vmem>>, %arg6: memref<16x96xf32, #tpu.memory_space<vmem>>, %arg7: memref<16x96xf32, #tpu.memory_space<vmem>>) attributes {dimension_semantics = [#tpu.dimension_semantics<parallel>, #tpu.dimension_semantics<parallel>, #tpu.dimension_semantics<arbitrary>], iteration_bounds = array<i64: 1, 1, 1>, scalar_prefetch = 0 : i64, scratch_operands = 1 : i64, tpu.core_type = #tpu.core_type<tc>, window_params = [{transform_indices = @transform_0, window_bounds = array<i64: 16, 32>}, {transform_indices = @transform_1, window_bounds = array<i64: 96, 32>}, {transform_indices = @transform_2, window_bounds = array<i64: 1, 96>}, {transform_indices = @transform_3, window_bounds = array<i64: 16, 96>}]} {
    %c0_i32 = arith.constant 0 : i32
    %0 = arith.cmpi eq, %arg2, %c0_i32 : i32
    %1 = arith.extui %0 : i1 to i32
    %c0_i32_0 = arith.constant 0 : i32
    %2 = arith.cmpi ne, %1, %c0_i32_0 : i32
    scf.if %2 {
      %cst_10 = arith.constant 0.000000e+00 : f32
      %12 = vector.broadcast %cst_10 : f32 to vector<16x96xf32>
      %c0_11 = arith.constant 0 : index
      %c0_12 = arith.constant 0 : index
      %13 = vector.load %arg7[%c0_11, %c0_12] : memref<16x96xf32, #tpu.memory_space<vmem>>, vector<16x96xf32>
      tpu.vector_store %arg7[%c0_11, %c0_12], %12 {strides = array<i32>} : memref<16x96xf32, #tpu.memory_space<vmem>>, vector<16x96xf32>,
    } else {
    }
    %c0 = arith.constant 0 : index
    %c0_1 = arith.constant 0 : index
    %3 = vector.load %arg7[%c0, %c0_1] : memref<16x96xf32, #tpu.memory_space<vmem>>, vector<16x96xf32>
    %c0_2 = arith.constant 0 : index
    %c0_3 = arith.constant 0 : index
    %4 = vector.load %arg3[%c0_2, %c0_3] : memref<16x32xf32, #tpu.memory_space<vmem>>, vector<16x32xf32>
    %c0_4 = arith.constant 0 : index
    %c0_5 = arith.constant 0 : index
    %5 = vector.load %arg4[%c0_4, %c0_5] : memref<96x32xf32, #tpu.memory_space<vmem>>, vector<96x32xf32>
    %cst = arith.constant dense<0.000000e+00> : vector<16x96xf32>
    %6 = tpu.matmul %4, %5, %cst {dimension_numbers = #tpu.dot_dimension_numbers<[1], [1], [0], [0], [0, 0, 1, 0], [], []>} : vector<16x32xf32>, vector<96x32xf32>, vector<16x96xf32> -> vector<16x96xf32>
    %7 = arith.addf %3, %6 : vector<16x96xf32>
    %c0_6 = arith.constant 0 : index
    %c0_7 = arith.constant 0 : index
    %8 = vector.load %arg7[%c0_6, %c0_7] : memref<16x96xf32, #tpu.memory_space<vmem>>, vector<16x96xf32>
    tpu.vector_store %arg7[%c0_6, %c0_7], %7 {strides = array<i32>} : memref<16x96xf32, #tpu.memory_space<vmem>>, vector<16x96xf32>,
    %c0_i32_8 = arith.constant 0 : i32
    %9 = arith.cmpi eq, %arg2, %c0_i32_8 : i32
    %10 = arith.extui %9 : i1 to i32
    %c0_i32_9 = arith.constant 0 : i32
    %11 = arith.cmpi ne, %10, %c0_i32_9 : i32
    scf.if %11 {
      %c0_10 = arith.constant 0 : index
      %c0_11 = arith.constant 0 : index
      %12 = vector.load %arg7[%c0_10, %c0_11] : memref<16x96xf32, #tpu.memory_space<vmem>>, vector<16x96xf32>
      %c0_12 = arith.constant 0 : index
      %c0_13 = arith.constant 0 : index
      %13 = vector.load %arg5[%c0_12, %c0_13] : memref<1x96xf32, #tpu.memory_space<vmem>>, vector<1x96xf32>
      %14 = vector.broadcast %13 : vector<1x96xf32> to vector<16x96xf32>
      %15 = arith.addf %12, %14 : vector<16x96xf32>
      %c0_14 = arith.constant 0 : index
      %c0_15 = arith.constant 0 : index
      %16 = vector.load %arg6[%c0_14, %c0_15] : memref<16x96xf32, #tpu.memory_space<vmem>>, vector<16x96xf32>
      tpu.vector_store %arg6[%c0_14, %c0_15], %15 {strides = array<i32>} : memref<16x96xf32, #tpu.memory_space<vmem>>, vector<16x96xf32>,
    } else {
    }
    return
  }
  func.func @transform_0(%arg0: i32, %arg1: i32, %arg2: i32) -> (i32, i32) {
    %c0_i32 = arith.constant 0 : i32
    return %arg0, %arg2 : i32, i32
  }
  func.func @transform_1(%arg0: i32, %arg1: i32, %arg2: i32) -> (i32, i32) {
    %c0_i32 = arith.constant 0 : i32
    return %arg1, %arg2 : i32, i32
  }
  func.func @transform_2(%arg0: i32, %arg1: i32, %arg2: i32) -> (i32, i32) {
    %c0_i32 = arith.constant 0 : i32
    %c0_i32_0 = arith.constant 0 : i32
    return %c0_i32, %arg1 : i32, i32
  }
  func.func @transform_3(%arg0: i32, %arg1: i32, %arg2: i32) -> (i32, i32) {
    %c0_i32 = arith.constant 0 : i32
    return %arg0, %arg1 : i32, i32
  }
}

</mosaic_0001>

<llo_original>
// kernel: tpu_custom_call.1
$region0: #{tpu_custom_call.1}
  #allocation0 [shape = 'u32[]', space=smem, size = 0x4, offset = 0x4, fixed_abs, tag = 'smem constant byte address 0x4 - core index']
  #allocation1 [shape = 'u32[72,128]{1,0:T(1,128)}', space=vmem, size = 0x9000, scoped, tag = 'internal scratch']
  #allocation2 [shape = 'f32[16,96]{1,0:T(8,128)}', space=vmem, size = 0x2000, scoped, tag = 'scratch operand']
  %s0 = inlined_call_operand.vmem [shape: f32[16,32], index: 0, kind: input, shape index: {}]
  %s1 = inlined_call_operand.vmem [shape: f32[96,32], index: 1, kind: input, shape index: {}]
  %s2 = inlined_call_operand.vmem [shape: f32[1,96], index: 2, kind: input, shape index: {}]
  %s3 = inlined_call_operand.hbm [shape: f32[16,96], index: 3, kind: output, shape index: {}]
  %s4 = sld [smem:[#allocation0]]
  $region30: #{tpu_custom_call.1} parent=0
    _
  %s6 = ssub.s32 1, %s4
  %s7 = scalar_select 0, %s6, %s4
  $region1: #{tpu_custom_call.1} parent=0
    #allocation3 [shape = 'u8[8192]{0}', space=vmem, size = 0x2000, scoped, tag = 'output window, operand 0, single buffered']
    #allocation4 [shape = 's32[1]{0}', space=sflag, size = 0x4, scoped, tag = 'scoped memory for tpu_custom_call.1']
    %8 = vsyncpa [#allocation4], 0
    // Predicated region
    $region2: #{tpu_custom_call.1} parent=1 // pred_check
      _
    $region3: #{tpu_custom_call.1} parent=1 // pred_check_branch
      %10 = sbr.rel (0) target = $region5
    $region4: #{tpu_custom_call.1} parent=1 // pred_region
      _
    $region5: #{tpu_custom_call.1} parent=1 // pred_fallthru
      _
    // Predicated region
    $region6: #{tpu_custom_call.1} parent=1 // pred_check
      _
    $region7: #{tpu_custom_call.1} parent=1 // pred_check_branch
      %12 = sbr.rel (0) target = $region9
    $region8: #{tpu_custom_call.1} parent=1 // pred_region
      _
    $region9: #{tpu_custom_call.1} parent=1 // pred_fallthru
      _
    // Predicated region
    $region10: #{tpu_custom_call.1} parent=1 // pred_check
      _
    $region11: #{tpu_custom_call.1} parent=1 // pred_check_branch
      %14 = sbr.rel (0) target = $region13
    $region12: #{tpu_custom_call.1} parent=1 // pred_region
      _
    $region13: #{tpu_custom_call.1} parent=1 // pred_fallthru
      _
    %p15 = scmp.eq.s32.totalorder 0, 0
    // Predicated region
    $region14: #{tpu_custom_call.1} parent=1 // pred_check
      %p16 = pneg %p15
    $region15: #{tpu_custom_call.1} parent=1 // pred_check_branch
      %18 = sbr.rel (%p16) target = $region17
    $region16: #{tpu_custom_call.1} parent=1 // pred_region
      %vm19 = vcmask 785408
      %20 = vst.msk [vmem:[#allocation2] sm:$0xff] %vm19, 0.0
      %21 = vst.msk [vmem:[#allocation2 + $0x8] sm:$0xff] %vm19, 0.0
    $region17: #{tpu_custom_call.1} parent=1 // pred_fallthru
      _
    %v22 = vld [vmem:[#allocation2] sm:$0xff]
    %v23 = vld [vmem:[#allocation2 + $0x8] sm:$0xff]
    %v24 = vld [vmem:[%s0] sm:$0xff]
    %v25 = vld [vmem:[%s0 + $0x8] sm:$0xff]
    %v26 = vld [vmem:[%s1] sm:$0xff]
    %v27 = vld [vmem:[%s1 + $0x8] sm:$0xff]
    %v28 = vld [vmem:[%s1 + $0x10] sm:$0xff]
    %v29 = vld [vmem:[%s1 + $0x18] sm:$0xff]
    %v30 = vld [vmem:[%s1 + $0x20] sm:$0xff]
    %v31 = vld [vmem:[%s1 + $0x28] sm:$0xff]
    %v32 = vld [vmem:[%s1 + $0x30] sm:$0xff]
    %v33 = vld [vmem:[%s1 + $0x38] sm:$0xff]
    %v34 = vld [vmem:[%s1 + $0x40] sm:$0xff]
    %v35 = vld [vmem:[%s1 + $0x48] sm:$0xff]
    %v36 = vld [vmem:[%s1 + $0x50] sm:$0xff]
    %v37 = vld [vmem:[%s1 + $0x58] sm:$0xff]
    %vm38 = vcmask 261120
    %v40 = vsel %vm38, %v24, 0
    %v43 = vsel %vm38, %v25, 0
    %v46 = vsel %vm38, %v26, 0
    %v49 = vsel %vm38, %v27, 0
    %v52 = vsel %vm38, %v28, 0
    %v55 = vsel %vm38, %v29, 0
    %v58 = vsel %vm38, %v30, 0
    %v61 = vsel %vm38, %v31, 0
    %v64 = vsel %vm38, %v32, 0
    %v67 = vsel %vm38, %v33, 0
    %v70 = vsel %vm38, %v34, 0
    %v73 = vsel %vm38, %v35, 0
    %v76 = vsel %vm38, %v36, 0
    %v79 = vsel %vm38, %v37, 0
    %81 = vmatpush.xpose.msra.mxu0 0.0
    %82 = vmatpush.xpose.msra.mxu0 0.0
    %83 = vmatpush.xpose.msra.mxu0 0.0
    %84 = vmatpush.xpose.msra.mxu0 0.0
    %85 = vmatpush.xpose.msra.mxu0 %v79
    %86 = vmatpush.xpose.msra.mxu0 %v76
    %87 = vmatpush.xpose.msra.mxu0 %v73
    %88 = vmatpush.xpose.msra.mxu0 %v70
    %89 = vmatpush.xpose.msra.mxu0 %v67
    %90 = vmatpush.xpose.msra.mxu0 %v64
    %91 = vmatpush.xpose.msra.mxu0 %v61
    %92 = vmatpush.xpose.msra.mxu0 %v58
    %93 = vmatpush.xpose.msra.mxu0 %v55
    %94 = vmatpush.xpose.msra.mxu0 %v52
    %95 = vmatpush.xpose.msra.mxu0 %v49
    %96 = vmatpush.xpose.msra.mxu0 %v46
    %97 = vmatmul.f32.gmra.mxu0 %v40
    %v98 = vpop.f32.mrf.mxu0
    %v99 = vadd.f32 0.0, %v98
    %100 = vmatmul.f32.gmra.mxu0 %v43
    %v101 = vpop.f32.mrf.mxu0
    %v102 = vadd.f32 0.0, %v101
    %103 = vdwg.mxu0
    %v104 = vadd.f32 %v22, %v99
    %v105 = vadd.f32 %v23, %v102
    %vm106 = vcmask 785408
    %107 = vst.msk [vmem:[#allocation2] sm:$0xff] %vm106, %v104
    %108 = vst.msk [vmem:[#allocation2 + $0x8] sm:$0xff] %vm106, %v105
    // Predicated region
    $region18: #{tpu_custom_call.1} parent=1 // pred_check
      %p109 = pneg %p15
    $region19: #{tpu_custom_call.1} parent=1 // pred_check_branch
      %111 = sbr.rel (%p109) target = $region21
    $region20: #{tpu_custom_call.1} parent=1 // pred_region
      %v112 = vld [vmem:[#allocation2] sm:$0xff]
      %v113 = vld [vmem:[#allocation2 + $0x8] sm:$0xff]
      %v114 = vld [vmem:[%s2] sm:$0x1]
      %v116 = vperm.slane %v114, 0
      %v118 = vadd.f32 %v112, %v116
      %v119 = vadd.f32 %v113, %v116
      %120 = vst.msk [vmem:[#allocation3] sm:$0xff] %vm106, %v118
      %121 = vst.msk [vmem:[#allocation3 + $0x8] sm:$0xff] %vm106, %v119
    $region21: #{tpu_custom_call.1} parent=1 // pred_fallthru
      _
    // Predicated region
    $region22: #{tpu_custom_call.1} parent=1 // pred_check
      _
    $region23: #{tpu_custom_call.1} parent=1 // pred_check_branch
      %123 = sbr.rel (0) target = $region25
    $region24: #{tpu_custom_call.1} parent=1 // pred_region
      %125 = vsyncadd [#allocation4], 0
      %s126 = sshll.u32 [#allocation3], 4
      %s127 = int_to_ptr.vmem [resolvable:$true] %s126
      %s128 = sshll.u32 %s3, 4
      %s129 = int_to_ptr.hbm [resolvable:$true] %s128
      %134 = dma.vmem_to_hbm [thread:$0]  %s127, 256, %s129, [#allocation4], 128, 128, 8
    $region25: #{tpu_custom_call.1} parent=1 // pred_fallthru
      _
    // Predicated region
    $region26: #{tpu_custom_call.1} parent=1 // pred_check
      _
    $region27: #{tpu_custom_call.1} parent=1 // pred_check_branch
      %136 = sbr.rel (0) target = $region29
    $region28: #{tpu_custom_call.1} parent=1 // pred_region
      %138 = dma.done [#allocation4], 256
    $region29: #{tpu_custom_call.1} parent=1 // pred_fallthru
      _
    %139 = vsyncpa [#allocation4], 1

</llo_original>
